<compile_context>
chip_gen: v7x
topology: tpu7x:2x2x1
jax: 0.10.0
libtpu: 0.0.40
codegen_flags: <defaults>
</compile_context>

<pallas_src>
import functools

import jax
import jax.numpy as jnp
from jax.experimental import pallas as pl
from jax.experimental.pallas import tpu as pltpu

_LANE = 128
_BF16_SUBLANE = 16
_MIB = 1024 * 1024


def _round_up(x, m):
    return (x + m - 1) // m * m


def _feat_pad(f):
    # Dims already >= 256 get 256-alignment (full MXU panels on v6e/v7x); small dims
    # stay 128-aligned so tiny demo layers aren't inflated further.
    return _round_up(f, 256) if f >= 256 else _round_up(f, _LANE)


def _encoder_kernel(x_ref,
                    w1_ref, t1_ref,
                    w2_ref, t2_ref,
                    w3_ref, t3_ref,
                    h1_ref, h2_ref, h3_ref):
    """Fused 3-layer MLP: (matmul -> +shift -> ReLU) x 3 (BN scale pre-folded into W).

    x / weights arrive in bf16; accumulation and the shift+ReLU epilogue are f32;
    outputs are stored in `out_dtype` (bf16 by default).
    """
    x = x_ref[...]                                                    # (TILE, K_p) bf16

    # Layer 1: relu(x @ (W1*scale1) + shift1)
    y1 = jnp.dot(x, w1_ref[...], preferred_element_type=jnp.float32)
    h1 = jnp.maximum(y1 + t1_ref[...], 0.0)
    h1_ref[...] = h1.astype(h1_ref.dtype)

    # Layer 2
    y2 = jnp.dot(h1.astype(w2_ref.dtype), w2_ref[...],
                 preferred_element_type=jnp.float32)
    h2 = jnp.maximum(y2 + t2_ref[...], 0.0)
    h2_ref[...] = h2.astype(h2_ref.dtype)

    # Layer 3
    y3 = jnp.dot(h2.astype(w3_ref.dtype), w3_ref[...],
                 preferred_element_type=jnp.float32)
    h3 = jnp.maximum(y3 + t3_ref[...], 0.0)
    h3_ref[...] = h3.astype(h3_ref.dtype)


def _fold_bn(bias, gamma, beta, running_mean, running_var, eps=0.001):
    """Fold Linear bias + eval-mode BatchNorm1d into per-feature scale & shift."""
    scale = gamma / jnp.sqrt(running_var + eps)          # (F,)
    shift = (bias - running_mean) * scale + beta         # (F,)
    return scale.reshape(1, -1), shift.reshape(1, -1)


def _pad2(a, rows, cols):
    """Zero-pad a 2-D array up to (rows, cols)."""
    return jnp.pad(a, ((0, rows - a.shape[0]), (0, cols - a.shape[1])))


def _const_spec(shape):
    """Constant-index input: VMEM-resident across all grid steps; single-buffered
    (no re-DMA, so no pipelining is lost and the duplicate weight copy is freed)."""
    index_map = lambda i: (0, 0)
    try:
        return pl.BlockSpec(shape, index_map, pipeline_mode=pl.Buffered(1))
    except Exception:  # older BlockSpec without pipeline_mode support
        return pl.BlockSpec(shape, index_map)


def _vmem_estimate(tile, K_p, F3, F2, F1, out_bytes):
    """Rough live-VMEM bytes per grid step (activations double-buffered, weights single)."""
    act_in = tile * K_p * 2                        # x tile, bf16
    act_out = tile * (F3 + F2 + F1) * out_bytes    # h1/h2/h3 tiles
    weights = (K_p * F3 + F3 * F2 + F2 * F1) * 2   # bf16, single-buffered
    shifts = (F3 + F2 + F1) * 4                    # f32
    scratch = tile * (F3 + F2 + F1) * 4            # f32 intermediates
    return 2 * (act_in + act_out) + weights + shifts + scratch


@functools.partial(jax.jit, static_argnames=("tile_n", "out_dtype", "unpad"))
def encoder_forward(x, params, tile_n=1024, out_dtype=jnp.bfloat16, unpad=True):
    """params: dict with w1,w2,w3 (F_in,F_out) f32 and s1,t1,s2,t2,s3,t3 (1,F_out) f32."""
    N, K = x.shape
    n3 = params["w1"].shape[1]
    n2 = params["w2"].shape[1]
    n1 = params["w3"].shape[1]

    K_p = _feat_pad(K)
    F3 = _feat_pad(n3)
    F2 = _feat_pad(n2)
    F1 = _feat_pad(n1)
    out_bytes = jnp.dtype(out_dtype).itemsize

    # ---- VMEM budget (trace-time hardware query; conservative fallback). ----
    try:
        vmem_cap = int(pltpu.get_tpu_info().vmem_capacity_bytes)
    except Exception:
        vmem_cap = 64 * _MIB      # v7x per-TC physical; safe lower bound everywhere
    budget = int(0.7 * vmem_cap)

    # ---- Batch tiling: multiple of 16 (bf16 packing), balanced across grid steps,
    #      >= 2 steps whenever N allows (keep v7x's 2nd core busy), VMEM-capped. ----
    tile_cap = max(_BF16_SUBLANE, (tile_n // _BF16_SUBLANE) * _BF16_SUBLANE)
    min_grid = 2 if _round_up(N, _BF16_SUBLANE) >= 2 * _BF16_SUBLANE else 1
    grid_n = max(pl.cdiv(N, tile_cap), min_grid)
    tile = _round_up(pl.cdiv(N, grid_n), _BF16_SUBLANE)
    while (tile > _BF16_SUBLANE
           and _vmem_estimate(tile, K_p, F3, F2, F1, out_bytes) > budget):
        grid_n *= 2
        tile = _round_up(pl.cdiv(N, grid_n), _BF16_SUBLANE)
    N_p = grid_n * tile

    est = _vmem_estimate(tile, K_p, F3, F2, F1, out_bytes)
    vmem_limit = int(min(max(2 * est, 32 * _MIB), budget))

    cdt = jnp.bfloat16
    x_p = _pad2(x, N_p, K_p).astype(cdt)
    # Fold the BN scale into the weight columns in f32, then pad + cast to bf16.
    w1 = _pad2(params["w1"] * params["s1"], K_p, F3).astype(cdt)
    w2 = _pad2(params["w2"] * params["s2"], F3, F2).astype(cdt)
    w3 = _pad2(params["w3"] * params["s3"], F2, F1).astype(cdt)
    # Zero-padded shifts => ReLU output is exactly 0 in pad lanes (no leakage).
    t1 = _pad2(params["t1"], 1, F3)
    t2 = _pad2(params["t2"], 1, F2)
    t3 = _pad2(params["t3"], 1, F1)

    def act_spec(f):
        # Activation tiles march along the batch dimension.
        return pl.BlockSpec((tile, f), lambda i: (i, 0))

    h1_p, h2_p, h3_p = pl.pallas_call(
        _encoder_kernel,
        grid=(grid_n,),
        in_specs=[
            act_spec(K_p),
            _const_spec((K_p, F3)), _const_spec((1, F3)),
            _const_spec((F3, F2)), _const_spec((1, F2)),
            _const_spec((F2, F1)), _const_spec((1, F1)),
        ],
        out_specs=(act_spec(F3), act_spec(F2), act_spec(F1)),
        out_shape=(
            jax.ShapeDtypeStruct((N_p, F3), out_dtype),
            jax.ShapeDtypeStruct((N_p, F2), out_dtype),
            jax.ShapeDtypeStruct((N_p, F1), out_dtype),
        ),
        compiler_params=pltpu.CompilerParams(
            dimension_semantics=("parallel",),
            vmem_limit_bytes=vmem_limit),
    )(x_p, w1, t1, w2, t2, w3, t3)

    if not unpad:
        # Consumers that accept padded (N_p, F*) activations skip an extra HBM
        # round-trip per output here.
        return h3_p, h1_p, h2_p, h3_p

    h1 = h1_p[:N, :n3]
    h2 = h2_p[:N, :n2]
    h3 = h3_p[:N, :n1]
    return h3, h1, h2, h3  # forward() returns h == enc_h3 in the g=None branch


def make_params(key, n4, n3, n2, n1):
    """Deterministic synthetic parameters mimicking nn.Linear / BatchNorm1d shapes."""
    def linear(key, fan_in, fan_out):
        kw, kb = jax.random.split(key)
        bound = 1.0 / jnp.sqrt(jnp.float32(fan_in))
        # PyTorch Linear weight is (out, in); we store transposed (in, out).
        w = jax.random.uniform(kw, (fan_in, fan_out), jnp.float32, -bound, bound)
        b = jax.random.uniform(kb, (fan_out,), jnp.float32, -bound, bound)
        return w, b

    def bn(key, f):
        kg, kb, km, kv = jax.random.split(key, 4)
        gamma = 1.0 + 0.1 * jax.random.normal(kg, (f,), jnp.float32)
        beta = 0.1 * jax.random.normal(kb, (f,), jnp.float32)
        rmean = 0.1 * jax.random.normal(km, (f,), jnp.float32)
        rvar = jnp.abs(jax.random.normal(kv, (f,), jnp.float32)) + 0.5
        return gamma, beta, rmean, rvar

    keys = jax.random.split(key, 6)
    w1, b1 = linear(keys[0], n4, n3)
    w2, b2 = linear(keys[1], n3, n2)
    w3, b3 = linear(keys[2], n2, n1)
    s1, t1 = _fold_bn(b1, *bn(keys[3], n3))
    s2, t2 = _fold_bn(b2, *bn(keys[4], n2))
    s3, t3 = _fold_bn(b3, *bn(keys[5], n1))
    return dict(w1=w1, s1=s1, t1=t1,
                w2=w2, s2=s2, t2=t2,
                w3=w3, s3=s3, t3=t3)


if __name__ == "__main__":
    # Small shapes consistent with Encoder(n1, n2, n3, n4, ...): x is (batch, n4).
    N, n4, n3, n2, n1 = 16, 32, 24, 16, 8

    key = jax.random.PRNGKey(0)
    kx, kp = jax.random.split(key)
    x = jax.random.normal(kx, (N, n4), jnp.float32)
    params = make_params(kp, n4, n3, n2, n1)

    h, enc_h1, enc_h2, enc_h3 = encoder_forward(x, params)
    jax.block_until_ready((h, enc_h1, enc_h2, enc_h3))

    # Sanity: shapes match the PyTorch module's outputs.
    assert h.shape == (N, n1)
    assert enc_h1.shape == (N, n3)
    assert enc_h2.shape == (N, n2)
    assert enc_h3.shape == (N, n1)

    # Cross-check against a plain-JAX f32 reference of the same math.
    # (Kernel uses bf16 inputs/weights/outputs with f32 accumulation -> bf16 tolerance.)
    def ref(x, p):
        a1 = jnp.maximum(x @ p["w1"] * p["s1"] + p["t1"], 0.0)
        a2 = jnp.maximum(a1 @ p["w2"] * p["s2"] + p["t2"], 0.0)
        a3 = jnp.maximum(a2 @ p["w3"] * p["s3"] + p["t3"], 0.0)
        return a3, a1, a2, a3

    r_h, r1, r2, r3 = ref(x, params)
    for got, want in ((h, r_h), (enc_h1, r1), (enc_h2, r2), (enc_h3, r3)):
        assert jnp.allclose(got.astype(jnp.float32), want, rtol=5e-2, atol=5e-2)

    print("KERNEL_OK")
</pallas_src>

<mosaic_0001>
module attributes {stable_mosaic.version = 11 : i64} {
  func.func @_encoder_kernel(%arg0: i32, %arg1: memref<16x128xbf16, #tpu.memory_space<vmem>>, %arg2: memref<128x128xbf16, #tpu.memory_space<vmem>>, %arg3: memref<1x128xf32, #tpu.memory_space<vmem>>, %arg4: memref<128x128xbf16, #tpu.memory_space<vmem>>, %arg5: memref<1x128xf32, #tpu.memory_space<vmem>>, %arg6: memref<128x128xbf16, #tpu.memory_space<vmem>>, %arg7: memref<1x128xf32, #tpu.memory_space<vmem>>, %arg8: memref<16x128xbf16, #tpu.memory_space<vmem>>, %arg9: memref<16x128xbf16, #tpu.memory_space<vmem>>, %arg10: memref<16x128xbf16, #tpu.memory_space<vmem>>) attributes {dimension_semantics = [#tpu.dimension_semantics<parallel>], iteration_bounds = array<i64: 1>, scalar_prefetch = 0 : i64, scratch_operands = 0 : i64, tpu.core_type = #tpu.core_type<tc>, window_params = [{transform_indices = @transform_0, window_bounds = array<i64: 16, 128>}, {pipeline_mode = #tpu.pipeline_mode<synchronous>, transform_indices = @transform_1, window_bounds = array<i64: 128, 128>}, {pipeline_mode = #tpu.pipeline_mode<synchronous>, transform_indices = @transform_2, window_bounds = array<i64: 1, 128>}, {pipeline_mode = #tpu.pipeline_mode<synchronous>, transform_indices = @transform_3, window_bounds = array<i64: 128, 128>}, {pipeline_mode = #tpu.pipeline_mode<synchronous>, transform_indices = @transform_4, window_bounds = array<i64: 1, 128>}, {pipeline_mode = #tpu.pipeline_mode<synchronous>, transform_indices = @transform_5, window_bounds = array<i64: 128, 128>}, {pipeline_mode = #tpu.pipeline_mode<synchronous>, transform_indices = @transform_6, window_bounds = array<i64: 1, 128>}, {transform_indices = @transform_7, window_bounds = array<i64: 16, 128>}, {transform_indices = @transform_8, window_bounds = array<i64: 16, 128>}, {transform_indices = @transform_9, window_bounds = array<i64: 16, 128>}]} {
    %c0 = arith.constant 0 : index
    %c0_0 = arith.constant 0 : index
    %0 = vector.load %arg1[%c0, %c0_0] : memref<16x128xbf16, #tpu.memory_space<vmem>>, vector<16x128xbf16>
    %c0_1 = arith.constant 0 : index
    %c0_2 = arith.constant 0 : index
    %1 = vector.load %arg2[%c0_1, %c0_2] : memref<128x128xbf16, #tpu.memory_space<vmem>>, vector<128x128xbf16>
    %cst = arith.constant dense<0.000000e+00> : vector<16x128xf32>
    %2 = tpu.matmul %0, %1, %cst {dimension_numbers = #tpu.dot_dimension_numbers<[1], [0], [0], [1], [0, 0, 1, 1], [], []>} : vector<16x128xbf16>, vector<128x128xbf16>, vector<16x128xf32> -> vector<16x128xf32>
    %c0_3 = arith.constant 0 : index
    %c0_4 = arith.constant 0 : index
    %3 = vector.load %arg3[%c0_3, %c0_4] : memref<1x128xf32, #tpu.memory_space<vmem>>, vector<1x128xf32>
    %4 = vector.broadcast %3 : vector<1x128xf32> to vector<16x128xf32>
    %5 = arith.addf %2, %4 : vector<16x128xf32>
    %cst_5 = arith.constant 0.000000e+00 : f32
    %6 = vector.broadcast %cst_5 : f32 to vector<16x128xf32>
    %7 = arith.maximumf %5, %6 : vector<16x128xf32>
    %8 = arith.truncf %7 : vector<16x128xf32> to vector<16x128xbf16>
    %c0_6 = arith.constant 0 : index
    %c0_7 = arith.constant 0 : index
    %9 = vector.load %arg8[%c0_6, %c0_7] : memref<16x128xbf16, #tpu.memory_space<vmem>>, vector<16x128xbf16>
    tpu.vector_store %arg8[%c0_6, %c0_7], %8 {strides = array<i32>} : memref<16x128xbf16, #tpu.memory_space<vmem>>, vector<16x128xbf16>,
    %10 = arith.truncf %7 : vector<16x128xf32> to vector<16x128xbf16>
    %c0_8 = arith.constant 0 : index
    %c0_9 = arith.constant 0 : index
    %11 = vector.load %arg4[%c0_8, %c0_9] : memref<128x128xbf16, #tpu.memory_space<vmem>>, vector<128x128xbf16>
    %cst_10 = arith.constant dense<0.000000e+00> : vector<16x128xf32>
    %12 = tpu.matmul %10, %11, %cst_10 {dimension_numbers = #tpu.dot_dimension_numbers<[1], [0], [0], [1], [0, 0, 1, 1], [], []>} : vector<16x128xbf16>, vector<128x128xbf16>, vector<16x128xf32> -> vector<16x128xf32>
    %c0_11 = arith.constant 0 : index
    %c0_12 = arith.constant 0 : index
    %13 = vector.load %arg5[%c0_11, %c0_12] : memref<1x128xf32, #tpu.memory_space<vmem>>, vector<1x128xf32>
    %14 = vector.broadcast %13 : vector<1x128xf32> to vector<16x128xf32>
    %15 = arith.addf %12, %14 : vector<16x128xf32>
    %cst_13 = arith.constant 0.000000e+00 : f32
    %16 = vector.broadcast %cst_13 : f32 to vector<16x128xf32>
    %17 = arith.maximumf %15, %16 : vector<16x128xf32>
    %18 = arith.truncf %17 : vector<16x128xf32> to vector<16x128xbf16>
    %c0_14 = arith.constant 0 : index
    %c0_15 = arith.constant 0 : index
    %19 = vector.load %arg9[%c0_14, %c0_15] : memref<16x128xbf16, #tpu.memory_space<vmem>>, vector<16x128xbf16>
    tpu.vector_store %arg9[%c0_14, %c0_15], %18 {strides = array<i32>} : memref<16x128xbf16, #tpu.memory_space<vmem>>, vector<16x128xbf16>,
    %20 = arith.truncf %17 : vector<16x128xf32> to vector<16x128xbf16>
    %c0_16 = arith.constant 0 : index
    %c0_17 = arith.constant 0 : index
    %21 = vector.load %arg6[%c0_16, %c0_17] : memref<128x128xbf16, #tpu.memory_space<vmem>>, vector<128x128xbf16>
    %cst_18 = arith.constant dense<0.000000e+00> : vector<16x128xf32>
    %22 = tpu.matmul %20, %21, %cst_18 {dimension_numbers = #tpu.dot_dimension_numbers<[1], [0], [0], [1], [0, 0, 1, 1], [], []>} : vector<16x128xbf16>, vector<128x128xbf16>, vector<16x128xf32> -> vector<16x128xf32>
    %c0_19 = arith.constant 0 : index
    %c0_20 = arith.constant 0 : index
    %23 = vector.load %arg7[%c0_19, %c0_20] : memref<1x128xf32, #tpu.memory_space<vmem>>, vector<1x128xf32>
    %24 = vector.broadcast %23 : vector<1x128xf32> to vector<16x128xf32>
    %25 = arith.addf %22, %24 : vector<16x128xf32>
    %cst_21 = arith.constant 0.000000e+00 : f32
    %26 = vector.broadcast %cst_21 : f32 to vector<16x128xf32>
    %27 = arith.maximumf %25, %26 : vector<16x128xf32>
    %28 = arith.truncf %27 : vector<16x128xf32> to vector<16x128xbf16>
    %c0_22 = arith.constant 0 : index
    %c0_23 = arith.constant 0 : index
    %29 = vector.load %arg10[%c0_22, %c0_23] : memref<16x128xbf16, #tpu.memory_space<vmem>>, vector<16x128xbf16>
    tpu.vector_store %arg10[%c0_22, %c0_23], %28 {strides = array<i32>} : memref<16x128xbf16, #tpu.memory_space<vmem>>, vector<16x128xbf16>,
    return
  }
  func.func @transform_0(%arg0: i32) -> (i32, i32) {
    %c0_i32 = arith.constant 0 : i32
    %c0_i32_0 = arith.constant 0 : i32
    return %arg0, %c0_i32 : i32, i32
  }
  func.func @transform_1(%arg0: i32) -> (i32, i32) {
    %c0_i32 = arith.constant 0 : i32
    %c0_i32_0 = arith.constant 0 : i32
    %c0_i32_1 = arith.constant 0 : i32
    return %c0_i32, %c0_i32_0 : i32, i32
  }
  func.func @transform_2(%arg0: i32) -> (i32, i32) {
    %c0_i32 = arith.constant 0 : i32
    %c0_i32_0 = arith.constant 0 : i32
    %c0_i32_1 = arith.constant 0 : i32
    return %c0_i32, %c0_i32_0 : i32, i32
  }
  func.func @transform_3(%arg0: i32) -> (i32, i32) {
    %c0_i32 = arith.constant 0 : i32
    %c0_i32_0 = arith.constant 0 : i32
    %c0_i32_1 = arith.constant 0 : i32
    return %c0_i32, %c0_i32_0 : i32, i32
  }
  func.func @transform_4(%arg0: i32) -> (i32, i32) {
    %c0_i32 = arith.constant 0 : i32
    %c0_i32_0 = arith.constant 0 : i32
    %c0_i32_1 = arith.constant 0 : i32
    return %c0_i32, %c0_i32_0 : i32, i32
  }
  func.func @transform_5(%arg0: i32) -> (i32, i32) {
    %c0_i32 = arith.constant 0 : i32
    %c0_i32_0 = arith.constant 0 : i32
    %c0_i32_1 = arith.constant 0 : i32
    return %c0_i32, %c0_i32_0 : i32, i32
  }
  func.func @transform_6(%arg0: i32) -> (i32, i32) {
    %c0_i32 = arith.constant 0 : i32
    %c0_i32_0 = arith.constant 0 : i32
    %c0_i32_1 = arith.constant 0 : i32
    return %c0_i32, %c0_i32_0 : i32, i32
  }
  func.func @transform_7(%arg0: i32) -> (i32, i32) {
    %c0_i32 = arith.constant 0 : i32
    %c0_i32_0 = arith.constant 0 : i32
    return %arg0, %c0_i32 : i32, i32
  }
  func.func @transform_8(%arg0: i32) -> (i32, i32) {
    %c0_i32 = arith.constant 0 : i32
    %c0_i32_0 = arith.constant 0 : i32
    return %arg0, %c0_i32 : i32, i32
  }
  func.func @transform_9(%arg0: i32) -> (i32, i32) {
    %c0_i32 = arith.constant 0 : i32
    %c0_i32_0 = arith.constant 0 : i32
    return %arg0, %c0_i32 : i32, i32
  }
}

</mosaic_0001>

<llo_original>
// kernel: encoder_forward.1
$region0: #{encoder_forward.1}
  #allocation0 [shape = 'u32[]', space=smem, size = 0x4, offset = 0x4, fixed_abs, tag = 'smem constant byte address 0x4 - core index']
  #allocation1 [shape = 'u32[144,128]{1,0:T(1,128)}', space=vmem, size = 0x12000, scoped, tag = 'internal scratch']
  %s0 = inlined_call_operand.vmem [shape: bf16[16,128], index: 0, kind: input, shape index: {}]
  %s1 = inlined_call_operand.vmem [shape: bf16[128,128], index: 1, kind: input, shape index: {}]
  %s2 = inlined_call_operand.vmem [shape: f32[1,128], index: 2, kind: input, shape index: {}]
  %s3 = inlined_call_operand.vmem [shape: bf16[128,128], index: 3, kind: input, shape index: {}]
  %s4 = inlined_call_operand.vmem [shape: f32[1,128], index: 4, kind: input, shape index: {}]
  %s5 = inlined_call_operand.vmem [shape: bf16[128,128], index: 5, kind: input, shape index: {}]
  %s6 = inlined_call_operand.vmem [shape: f32[1,128], index: 6, kind: input, shape index: {}]
  %s7 = inlined_call_operand.hbm [shape: bf16[16,128], index: 7, kind: output, shape index: {0}]
  %s8 = inlined_call_operand.hbm [shape: bf16[16,128], index: 8, kind: output, shape index: {1}]
  %s9 = inlined_call_operand.vmem [shape: bf16[16,128], index: 9, kind: output, shape index: {2}]
  %10 = xla_tuple %s7, %s8, %s9
  %s11 = sld [smem:[#allocation0]]
  $region54: #{encoder_forward.1} parent=0
    _
  %s13 = ssub.s32 1, %s11
  %s14 = scalar_select 0, %s13, %s11
  $region1: #{encoder_forward.1} parent=0
    #allocation2 [shape = 'u8[4096]{0}', space=vmem, size = 0x1000, scoped, tag = 'output window, operand 0, single buffered']
    #allocation3 [shape = 's32[1]{0}', space=sflag, size = 0x4, scoped, tag = 'scoped memory for encoder_forward.1']
    #allocation4 [shape = 'u8[4096]{0}', space=vmem, size = 0x1000, scoped, tag = 'output window, operand 1, single buffered']
    #allocation5 [shape = 's32[1]{0}', space=sflag, size = 0x4, scoped, tag = 'scoped memory for encoder_forward.1']
    %15 = vsyncpa [#allocation3], 0
    %16 = vsyncpa [#allocation5], 0
    // Predicated region
    $region2: #{encoder_forward.1} parent=1 // pred_check
      _
    $region3: #{encoder_forward.1} parent=1 // pred_check_branch
      %18 = sbr.rel (0) target = $region5
    $region4: #{encoder_forward.1} parent=1 // pred_region
      _
    $region5: #{encoder_forward.1} parent=1 // pred_fallthru
      _
    // Predicated region
    $region6: #{encoder_forward.1} parent=1 // pred_check
      _
    $region7: #{encoder_forward.1} parent=1 // pred_check_branch
      %20 = sbr.rel (0) target = $region9
    $region8: #{encoder_forward.1} parent=1 // pred_region
      _
    $region9: #{encoder_forward.1} parent=1 // pred_fallthru
      _
    // Predicated region
    $region10: #{encoder_forward.1} parent=1 // pred_check
      _
    $region11: #{encoder_forward.1} parent=1 // pred_check_branch
      %22 = sbr.rel (0) target = $region13
    $region12: #{encoder_forward.1} parent=1 // pred_region
      _
    $region13: #{encoder_forward.1} parent=1 // pred_fallthru
      _
    // Predicated region
    $region14: #{encoder_forward.1} parent=1 // pred_check
      _
    $region15: #{encoder_forward.1} parent=1 // pred_check_branch
      %24 = sbr.rel (0) target = $region17
    $region16: #{encoder_forward.1} parent=1 // pred_region
      _
    $region17: #{encoder_forward.1} parent=1 // pred_fallthru
      _
    // Predicated region
    $region18: #{encoder_forward.1} parent=1 // pred_check
      _
    $region19: #{encoder_forward.1} parent=1 // pred_check_branch
      %26 = sbr.rel (0) target = $region21
    $region20: #{encoder_forward.1} parent=1 // pred_region
      _
    $region21: #{encoder_forward.1} parent=1 // pred_fallthru
      _
    // Predicated region
    $region22: #{encoder_forward.1} parent=1 // pred_check
      _
    $region23: #{encoder_forward.1} parent=1 // pred_check_branch
      %28 = sbr.rel (0) target = $region25
    $region24: #{encoder_forward.1} parent=1 // pred_region
      _
    $region25: #{encoder_forward.1} parent=1 // pred_fallthru
      _
    // Predicated region
    $region26: #{encoder_forward.1} parent=1 // pred_check
      _
    $region27: #{encoder_forward.1} parent=1 // pred_check_branch
      %30 = sbr.rel (0) target = $region29
    $region28: #{encoder_forward.1} parent=1 // pred_region
      _
    $region29: #{encoder_forward.1} parent=1 // pred_fallthru
      _
    %v32 = vld [vmem:[%s0] sm:$0xf]
    %v33 = vld [vmem:[%s0 + $0x4] sm:$0xf]
    %v34 = vld [vmem:[%s1] sm:$0xf]
    %v35 = vld [vmem:[%s1 + $0x4] sm:$0xf]
    %v36 = vld [vmem:[%s1 + $0x8] sm:$0xf]
    %v37 = vld [vmem:[%s1 + $0xc] sm:$0xf]
    %v38 = vld [vmem:[%s1 + $0x10] sm:$0xf]
    %v39 = vld [vmem:[%s1 + $0x14] sm:$0xf]
    %v40 = vld [vmem:[%s1 + $0x18] sm:$0xf]
    %v41 = vld [vmem:[%s1 + $0x1c] sm:$0xf]
    %v42 = vld [vmem:[%s1 + $0x20] sm:$0xf]
    %v43 = vld [vmem:[%s1 + $0x24] sm:$0xf]
    %v44 = vld [vmem:[%s1 + $0x28] sm:$0xf]
    %v45 = vld [vmem:[%s1 + $0x2c] sm:$0xf]
    %v46 = vld [vmem:[%s1 + $0x30] sm:$0xf]
    %v47 = vld [vmem:[%s1 + $0x34] sm:$0xf]
    %v48 = vld [vmem:[%s1 + $0x38] sm:$0xf]
    %v49 = vld [vmem:[%s1 + $0x3c] sm:$0xf]
    %v50 = vld [vmem:[%s2] sm:$0x1]
    %v52 = vlaneseq
    %v53 = vshrl.u32 %v52, 7
    %v54 = vsub.s32 0, %v53
    %v55 = vrot.slane %v50, %v54
    %v59 = vunpack.c.l.b16 %v32
    %v60 = vunpack.c.l.b16 %v33
    %v61 = vpack.c.b16 %v60, %v59
    %v79 = vunpack.c.l.b16 %v34
    %v80 = vunpack.c.l.b16 %v35
    %v81 = vunpack.c.l.b16 %v36
    %v82 = vunpack.c.l.b16 %v37
    %v83 = vunpack.c.l.b16 %v38
    %v84 = vunpack.c.l.b16 %v39
    %v85 = vunpack.c.l.b16 %v40
    %v86 = vunpack.c.l.b16 %v41
    %v87 = vunpack.c.l.b16 %v42
    %v88 = vunpack.c.l.b16 %v43
    %v89 = vunpack.c.l.b16 %v44
    %v90 = vunpack.c.l.b16 %v45
    %v91 = vunpack.c.l.b16 %v46
    %v92 = vunpack.c.l.b16 %v47
    %v93 = vunpack.c.l.b16 %v48
    %v94 = vunpack.c.l.b16 %v49
    %v95 = vpack.c.b16 %v80, %v79
    %v96 = vpack.c.b16 %v82, %v81
    %v97 = vpack.c.b16 %v84, %v83
    %v98 = vpack.c.b16 %v86, %v85
    %v99 = vpack.c.b16 %v88, %v87
    %v100 = vpack.c.b16 %v90, %v89
    %v101 = vpack.c.b16 %v92, %v91
    %v102 = vpack.c.b16 %v94, %v93
    %111 = vmatprep.subr.bf16.mxu0 0
    %112 = vmatpush1.bf16.msra.mxu0 %v95
    %113 = vmatprep.subr.bf16.mxu0 0
    %114 = vmatpush1.bf16.msra.mxu0 %v96
    %115 = vmatprep.subr.bf16.mxu0 0
    %116 = vmatpush1.bf16.msra.mxu0 %v97
    %117 = vmatprep.subr.bf16.mxu0 0
    %118 = vmatpush1.bf16.msra.mxu0 %v98
    %119 = vmatprep.subr.bf16.mxu0 0
    %120 = vmatpush1.bf16.msra.mxu0 %v99
    %121 = vmatprep.subr.bf16.mxu0 0
    %122 = vmatpush1.bf16.msra.mxu0 %v100
    %123 = vmatprep.subr.bf16.mxu0 0
    %124 = vmatpush1.bf16.msra.mxu0 %v101
    %125 = vmatprep.subr.bf16.mxu0 0
    %126 = vmatpush1.bf16.msra.mxu0 %v102
    %127 = vmatprep.subr.bf16.mxu0 0
    %128 = vmatpush1.bf16.msra.mxu0 0
    %129 = vmatprep.subr.bf16.mxu0 0
    %130 = vmatpush1.bf16.msra.mxu0 0
    %131 = vmatprep.subr.bf16.mxu0 0
    %132 = vmatpush1.bf16.msra.mxu0 0
    %133 = vmatprep.subr.bf16.mxu0 0
    %134 = vmatpush1.bf16.msra.mxu0 0
    %135 = vmatprep.subr.bf16.mxu0 0
    %136 = vmatpush1.bf16.msra.mxu0 0
    %137 = vmatprep.subr.bf16.mxu0 0
    %138 = vmatpush1.bf16.msra.mxu0 0
    %139 = vmatprep.subr.bf16.mxu0 0
    %140 = vmatpush1.bf16.msra.mxu0 0
    %141 = vmatprep.subr.bf16.mxu0 0
    %142 = vmatpush1.bf16.msra.mxu0 0
    %143 = vmatprep.mubr.bf16.mxu0 0
    %144 = vmatmul.mubr.bf16.gmra.mrb[0].mxu0 %v61
    %v145 = vpop.f32.mrb[0].mxu0
    %v146 = vadd.f32 %v55, %v145
    %v147 = vpop.f32.mrb[0].mxu0
    %v148 = vpop.f32.mrb[0].mxu0
    %v149 = vadd.f32 %v55, %v148
    %v150 = vpop.f32.mrb[0].mxu0
    %151 = vdwg.mxu0
    %v152 = vmax.f32 %v146, 0.0
    %v153 = vmax.f32 %v149, 0.0
    %v154 = vpack.c.bf16 %v153, %v152
    %v156 = vunpack.c.l.b16 %v154
    %v157 = vunpack.c.h.b16 %v154
    %v158 = vpack.c.b16 %v156, %v156
    %v159 = vpack.c.b16 %v157, %v157
    %162 = vst [vmem:[#allocation2] sm:$0xf] %v158
    %163 = vst [vmem:[#allocation2 + $0x4] sm:$0xf] %v159
    %v164 = vld [vmem:[%s3] sm:$0xf]
    %v165 = vld [vmem:[%s3 + $0x4] sm:$0xf]
    %v166 = vld [vmem:[%s3 + $0x8] sm:$0xf]
    %v167 = vld [vmem:[%s3 + $0xc] sm:$0xf]
    %v168 = vld [vmem:[%s3 + $0x10] sm:$0xf]
    %v169 = vld [vmem:[%s3 + $0x14] sm:$0xf]
    %v170 = vld [vmem:[%s3 + $0x18] sm:$0xf]
    %v171 = vld [vmem:[%s3 + $0x1c] sm:$0xf]
    %v172 = vld [vmem:[%s3 + $0x20] sm:$0xf]
    %v173 = vld [vmem:[%s3 + $0x24] sm:$0xf]
    %v174 = vld [vmem:[%s3 + $0x28] sm:$0xf]
    %v175 = vld [vmem:[%s3 + $0x2c] sm:$0xf]
    %v176 = vld [vmem:[%s3 + $0x30] sm:$0xf]
    %v177 = vld [vmem:[%s3 + $0x34] sm:$0xf]
    %v178 = vld [vmem:[%s3 + $0x38] sm:$0xf]
    %v179 = vld [vmem:[%s3 + $0x3c] sm:$0xf]
    %v180 = vld [vmem:[%s4] sm:$0x1]
    %v182 = vlaneseq
    %v183 = vshrl.u32 %v182, 7
    %v184 = vsub.s32 0, %v183
    %v185 = vrot.slane %v180, %v184
    %v203 = vunpack.c.l.b16 %v164
    %v204 = vunpack.c.l.b16 %v165
    %v205 = vunpack.c.l.b16 %v166
    %v206 = vunpack.c.l.b16 %v167
    %v207 = vunpack.c.l.b16 %v168
    %v208 = vunpack.c.l.b16 %v169
    %v209 = vunpack.c.l.b16 %v170
    %v210 = vunpack.c.l.b16 %v171
    %v211 = vunpack.c.l.b16 %v172
    %v212 = vunpack.c.l.b16 %v173
    %v213 = vunpack.c.l.b16 %v174
    %v214 = vunpack.c.l.b16 %v175
    %v215 = vunpack.c.l.b16 %v176
    %v216 = vunpack.c.l.b16 %v177
    %v217 = vunpack.c.l.b16 %v178
    %v218 = vunpack.c.l.b16 %v179
    %v219 = vpack.c.b16 %v204, %v203
    %v220 = vpack.c.b16 %v206, %v205
    %v221 = vpack.c.b16 %v208, %v207
    %v222 = vpack.c.b16 %v210, %v209
    %v223 = vpack.c.b16 %v212, %v211
    %v224 = vpack.c.b16 %v214, %v213
    %v225 = vpack.c.b16 %v216, %v215
    %v226 = vpack.c.b16 %v218, %v217
    %235 = vmatprep.subr.bf16.mxu0 0
    %236 = vmatpush1.bf16.msra.mxu0 %v219
    %237 = vmatprep.subr.bf16.mxu0 0
    %238 = vmatpush1.bf16.msra.mxu0 %v220
    %239 = vmatprep.subr.bf16.mxu0 0
    %240 = vmatpush1.bf16.msra.mxu0 %v221
    %241 = vmatprep.subr.bf16.mxu0 0
    %242 = vmatpush1.bf16.msra.mxu0 %v222
    %243 = vmatprep.subr.bf16.mxu0 0
    %244 = vmatpush1.bf16.msra.mxu0 %v223
    %245 = vmatprep.subr.bf16.mxu0 0
    %246 = vmatpush1.bf16.msra.mxu0 %v224
    %247 = vmatprep.subr.bf16.mxu0 0
    %248 = vmatpush1.bf16.msra.mxu0 %v225
    %249 = vmatprep.subr.bf16.mxu0 0
    %250 = vmatpush1.bf16.msra.mxu0 %v226
    %251 = vmatprep.subr.bf16.mxu0 0
    %252 = vmatpush1.bf16.msra.mxu0 0
    %253 = vmatprep.subr.bf16.mxu0 0
    %254 = vmatpush1.bf16.msra.mxu0 0
    %255 = vmatprep.subr.bf16.mxu0 0
    %256 = vmatpush1.bf16.msra.mxu0 0
    %257 = vmatprep.subr.bf16.mxu0 0
    %258 = vmatpush1.bf16.msra.mxu0 0
    %259 = vmatprep.subr.bf16.mxu0 0
    %260 = vmatpush1.bf16.msra.mxu0 0
    %261 = vmatprep.subr.bf16.mxu0 0
    %262 = vmatpush1.bf16.msra.mxu0 0
    %263 = vmatprep.subr.bf16.mxu0 0
    %264 = vmatpush1.bf16.msra.mxu0 0
    %265 = vmatprep.subr.bf16.mxu0 0
    %266 = vmatpush1.bf16.msra.mxu0 0
    %267 = vmatprep.mubr.bf16.mxu0 0
    %268 = vmatmul.mubr.bf16.gmra.mrb[0].mxu0 %v154
    %v269 = vpop.f32.mrb[0].mxu0
    %v270 = vadd.f32 %v185, %v269
    %v271 = vpop.f32.mrb[0].mxu0
    %v272 = vpop.f32.mrb[0].mxu0
    %v273 = vadd.f32 %v185, %v272
    %v274 = vpop.f32.mrb[0].mxu0
    %275 = vdwg.mxu0
    %v276 = vmax.f32 %v270, 0.0
    %v277 = vmax.f32 %v273, 0.0
    %v278 = vpack.c.bf16 %v277, %v276
    %v280 = vunpack.c.l.b16 %v278
    %v281 = vunpack.c.h.b16 %v278
    %v282 = vpack.c.b16 %v280, %v280
    %v283 = vpack.c.b16 %v281, %v281
    %286 = vst [vmem:[#allocation4] sm:$0xf] %v282
    %287 = vst [vmem:[#allocation4 + $0x4] sm:$0xf] %v283
    %v288 = vld [vmem:[%s5] sm:$0xf]
    %v289 = vld [vmem:[%s5 + $0x4] sm:$0xf]
    %v290 = vld [vmem:[%s5 + $0x8] sm:$0xf]
    %v291 = vld [vmem:[%s5 + $0xc] sm:$0xf]
    %v292 = vld [vmem:[%s5 + $0x10] sm:$0xf]
    %v293 = vld [vmem:[%s5 + $0x14] sm:$0xf]
    %v294 = vld [vmem:[%s5 + $0x18] sm:$0xf]
    %v295 = vld [vmem:[%s5 + $0x1c] sm:$0xf]
    %v296 = vld [vmem:[%s5 + $0x20] sm:$0xf]
    %v297 = vld [vmem:[%s5 + $0x24] sm:$0xf]
    %v298 = vld [vmem:[%s5 + $0x28] sm:$0xf]
    %v299 = vld [vmem:[%s5 + $0x2c] sm:$0xf]
    %v300 = vld [vmem:[%s5 + $0x30] sm:$0xf]
    %v301 = vld [vmem:[%s5 + $0x34] sm:$0xf]
    %v302 = vld [vmem:[%s5 + $0x38] sm:$0xf]
    %v303 = vld [vmem:[%s5 + $0x3c] sm:$0xf]
    %v304 = vld [vmem:[%s6] sm:$0x1]
    %v306 = vlaneseq
    %v307 = vshrl.u32 %v306, 7
    %v308 = vsub.s32 0, %v307
    %v309 = vrot.slane %v304, %v308
    %v327 = vunpack.c.l.b16 %v288
    %v328 = vunpack.c.l.b16 %v289
    %v329 = vunpack.c.l.b16 %v290
    %v330 = vunpack.c.l.b16 %v291
    %v331 = vunpack.c.l.b16 %v292
    %v332 = vunpack.c.l.b16 %v293
    %v333 = vunpack.c.l.b16 %v294
    %v334 = vunpack.c.l.b16 %v295
    %v335 = vunpack.c.l.b16 %v296
    %v336 = vunpack.c.l.b16 %v297
    %v337 = vunpack.c.l.b16 %v298
    %v338 = vunpack.c.l.b16 %v299
    %v339 = vunpack.c.l.b16 %v300
    %v340 = vunpack.c.l.b16 %v301
    %v341 = vunpack.c.l.b16 %v302
    %v342 = vunpack.c.l.b16 %v303
    %v343 = vpack.c.b16 %v328, %v327
    %v344 = vpack.c.b16 %v330, %v329
    %v345 = vpack.c.b16 %v332, %v331
    %v346 = vpack.c.b16 %v334, %v333
    %v347 = vpack.c.b16 %v336, %v335
    %v348 = vpack.c.b16 %v338, %v337
    %v349 = vpack.c.b16 %v340, %v339
    %v350 = vpack.c.b16 %v342, %v341
    %359 = vmatprep.subr.bf16.mxu0 0
    %360 = vmatpush1.bf16.msra.mxu0 %v343
    %361 = vmatprep.subr.bf16.mxu0 0
    %362 = vmatpush1.bf16.msra.mxu0 %v344
    %363 = vmatprep.subr.bf16.mxu0 0
    %364 = vmatpush1.bf16.msra.mxu0 %v345
    %365 = vmatprep.subr.bf16.mxu0 0
    %366 = vmatpush1.bf16.msra.mxu0 %v346
    %367 = vmatprep.subr.bf16.mxu0 0
    %368 = vmatpush1.bf16.msra.mxu0 %v347
    %369 = vmatprep.subr.bf16.mxu0 0
    %370 = vmatpush1.bf16.msra.mxu0 %v348
    %371 = vmatprep.subr.bf16.mxu0 0
    %372 = vmatpush1.bf16.msra.mxu0 %v349
    %373 = vmatprep.subr.bf16.mxu0 0
    %374 = vmatpush1.bf16.msra.mxu0 %v350
    %375 = vmatprep.subr.bf16.mxu0 0
    %376 = vmatpush1.bf16.msra.mxu0 0
    %377 = vmatprep.subr.bf16.mxu0 0
    %378 = vmatpush1.bf16.msra.mxu0 0
    %379 = vmatprep.subr.bf16.mxu0 0
    %380 = vmatpush1.bf16.msra.mxu0 0
    %381 = vmatprep.subr.bf16.mxu0 0
    %382 = vmatpush1.bf16.msra.mxu0 0
    %383 = vmatprep.subr.bf16.mxu0 0
    %384 = vmatpush1.bf16.msra.mxu0 0
    %385 = vmatprep.subr.bf16.mxu0 0
    %386 = vmatpush1.bf16.msra.mxu0 0
    %387 = vmatprep.subr.bf16.mxu0 0
    %388 = vmatpush1.bf16.msra.mxu0 0
    %389 = vmatprep.subr.bf16.mxu0 0
    %390 = vmatpush1.bf16.msra.mxu0 0
    %391 = vmatprep.mubr.bf16.mxu0 0
    %392 = vmatmul.mubr.bf16.gmra.mrb[0].mxu0 %v278
    %v393 = vpop.f32.mrb[0].mxu0
    %v394 = vadd.f32 %v309, %v393
    %v395 = vpop.f32.mrb[0].mxu0
    %v396 = vpop.f32.mrb[0].mxu0
    %v397 = vadd.f32 %v309, %v396
    %v398 = vpop.f32.mrb[0].mxu0
    %399 = vdwg.mxu0
    %v400 = vmax.f32 %v394, 0.0
    %v401 = vmax.f32 %v397, 0.0
    %v402 = vpack.c.bf16 %v401, %v400
    %v404 = vunpack.c.l.b16 %v402
    %v405 = vunpack.c.h.b16 %v402
    %v406 = vpack.c.b16 %v404, %v404
    %v407 = vpack.c.b16 %v405, %v405
    %410 = vst [vmem:[%s9] sm:$0xf] %v406
    %411 = vst [vmem:[%s9 + $0x4] sm:$0xf] %v407
    // Predicated region
    $region30: #{encoder_forward.1} parent=1 // pred_check
      _
    $region31: #{encoder_forward.1} parent=1 // pred_check_branch
      %413 = sbr.rel (0) target = $region33
    $region32: #{encoder_forward.1} parent=1 // pred_region
      %s415 = ssub.s32 128, 128
      %416 = vsyncadd [#allocation3], %s415
      %s417 = sshll.u32 [#allocation2], 4
      %s418 = int_to_ptr.vmem [resolvable:$true] %s417
      %423 = dma.vmem_to_hbm [thread:$0]  %s418, 128, %s7, [#allocation3], 64, 64, 4
    $region33: #{encoder_forward.1} parent=1 // pred_fallthru
      _
    // Predicated region
    $region34: #{encoder_forward.1} parent=1 // pred_check
      _
    $region35: #{encoder_forward.1} parent=1 // pred_check_branch
      %425 = sbr.rel (0) target = $region37
    $region36: #{encoder_forward.1} parent=1 // pred_region
      %s427 = ssub.s32 128, 128
      %428 = vsyncadd [#allocation5], %s427
      %s429 = sshll.u32 [#allocation4], 4
      %s430 = int_to_ptr.vmem [resolvable:$true] %s429
      %435 = dma.vmem_to_hbm [thread:$0]  %s430, 128, %s8, [#allocation5], 64, 64, 4
    $region37: #{encoder_forward.1} parent=1 // pred_fallthru
      _
    // Predicated region
    $region38: #{encoder_forward.1} parent=1 // pred_check
      _
    $region39: #{encoder_forward.1} parent=1 // pred_check_branch
      %437 = sbr.rel (0) target = $region41
    $region40: #{encoder_forward.1} parent=1 // pred_region
      _
    $region41: #{encoder_forward.1} parent=1 // pred_fallthru
      _
    // Predicated region
    $region42: #{encoder_forward.1} parent=1 // pred_check
      _
    $region43: #{encoder_forward.1} parent=1 // pred_check_branch
      %439 = sbr.rel (0) target = $region45
    $region44: #{encoder_forward.1} parent=1 // pred_region
      %440 = dma.done [#allocation3], 128
    $region45: #{encoder_forward.1} parent=1 // pred_fallthru
      _
    // Predicated region
    $region46: #{encoder_forward.1} parent=1 // pred_check
      _
    $region47: #{encoder_forward.1} parent=1 // pred_check_branch
      %442 = sbr.rel (0) target = $region49
    $region48: #{encoder_forward.1} parent=1 // pred_region
      %443 = dma.done [#allocation5], 128
    $region49: #{encoder_forward.1} parent=1 // pred_fallthru
      _
    // Predicated region
    $region50: #{encoder_forward.1} parent=1 // pred_check
      _
    $region51: #{encoder_forward.1} parent=1 // pred_check_branch
      %445 = sbr.rel (0) target = $region53
    $region52: #{encoder_forward.1} parent=1 // pred_region
      _
    $region53: #{encoder_forward.1} parent=1 // pred_fallthru
      _
    %446 = vsyncpa [#allocation3], 1
    %447 = vsyncpa [#allocation5], 1

</llo_original>
